<compile_context>
chip_gen: v7x
topology: tpu7x:2x2x1
jax: 0.10.0
libtpu: 0.0.40
codegen_flags: <defaults>
</compile_context>

<pallas_src>
import functools
import math

import jax
import jax.numpy as jnp
from jax import lax
from jax.experimental import pallas as pl
from jax.experimental.pallas import tpu as pltpu


def _round_up(a, b):
    return (a + b - 1) // b * b


def _pad_to(a, shape):
    pads = [(0, s - d) for d, s in zip(a.shape, shape)]
    if any(p[1] for p in pads):
        a = jnp.pad(a, pads)
    return a


def _device_defaults():
    """Generation-tuned tile sizes / VMEM budget."""
    kind = ""
    try:
        kind = jax.devices()[0].device_kind.lower()
    except Exception:
        pass
    if "v7" in kind:
        # 64 MiB VMEM / TC, 3.2 TB/s HBM (ridge ~310 FLOPs/byte), 2 TCs:
        # 1024x1024 tiles already exceed the ridge; cap VMEM well below 64 MiB
        # and make sure the parallel grid axes have >= 2 blocks.
        return dict(tm=1024, tn=1024, tk=1024, vmem=48 * 2**20, two_core=True)
    if "v6" in kind:
        # 128 MiB VMEM, ridge ~680 FLOPs/byte -> big tiles, big tk.
        return dict(tm=1024, tn=1024, tk=1024, vmem=100 * 2**20, two_core=False)
    if "v5" in kind:
        # v5e ridge ~240 FLOPs/byte; 512x512 (256 FLOPs/byte) is MXU-bound.
        return dict(tm=512, tn=512, tk=1024, vmem=100 * 2**20, two_core=False)
    return dict(tm=512, tn=512, tk=1024, vmem=64 * 2**20, two_core=False)


# ---------------------------------------------------------------------------
# Weight preprocessing: fused gate + transpose.
# Reads a (tn, tk) block of the original (N, K) weight, writes the gated,
# TRANSPOSED (tk, tn) bf16 block of the (K, N) MXU-ready weight.  Pure
# HBM-bound elementwise pass; the per-tile transpose rides the idle XLU slot.
# ---------------------------------------------------------------------------
def _gate_transpose_kernel(w_ref, o_ref):
    w = w_ref[...].astype(jnp.float32)            # gate in f32 for precision
    g = w * jnp.exp(-(w * w))
    o_ref[...] = jnp.transpose(g).astype(o_ref.dtype)


# ---------------------------------------------------------------------------
# General tiled matmul + bias kernel.
# grid = (M/tm, N/tn, K/tk); K is the sequential reduction axis.
# f32 accumulator in VMEM scratch; pre-gated bias added once at the last
# K step, then the tile is written back in the output dtype.
# ---------------------------------------------------------------------------
def _matmul_kernel(x_ref, w_ref, b_ref, o_ref, acc_ref, *, mxu_dtype):
    k = pl.program_id(2)

    @pl.when(k == 0)
    def _():
        acc_ref[...] = jnp.zeros_like(acc_ref)

    acc_ref[...] += jnp.dot(x_ref[...].astype(mxu_dtype), w_ref[...],
                            preferred_element_type=jnp.float32)

    @pl.when(k == pl.num_programs(2) - 1)
    def _():
        o_ref[...] = (acc_ref[...] + b_ref[...]).astype(o_ref.dtype)


# ---------------------------------------------------------------------------
# Small-M fast path (Mp == tm, single M block): weight-bandwidth bound, each
# weight element is consumed exactly once, so gate it in-kernel (EUP slot is
# idle under the MXU) and contract against the un-transposed (tn, tk) weight
# block via a trans-B dot_general.  No separate gate pass, no transpose, no
# wrapper cast of the weight.
# grid = (N/tn, K/tk).
# ---------------------------------------------------------------------------
def _small_m_kernel(x_ref, w_ref, b_ref, o_ref, acc_ref, *, mxu_dtype):
    k = pl.program_id(1)

    @pl.when(k == 0)
    def _():
        acc_ref[...] = jnp.zeros_like(acc_ref)

    w = w_ref[...].astype(jnp.float32)            # (tn, tk)
    wg = (w * jnp.exp(-(w * w))).astype(mxu_dtype)
    x = x_ref[...].astype(mxu_dtype)              # (tm, tk)
    acc_ref[...] += lax.dot_general(
        x, wg, dimension_numbers=(((1,), (1,)), ((), ())),
        preferred_element_type=jnp.float32)

    @pl.when(k == pl.num_programs(1) - 1)
    def _():
        o_ref[...] = (acc_ref[...] + b_ref[...]).astype(o_ref.dtype)


def xlu_linear(x, weight, bias=None, *, tm=None, tn=None, tk=None,
               mxu_dtype=jnp.bfloat16):
    """x: (M, K), weight: (N, K), bias: (N,) or None -> (M, N) in x.dtype."""
    M, K = x.shape
    N, Kw = weight.shape
    assert K == Kw
    out_dtype = x.dtype

    cfg = _device_defaults()
    auto_tn = tn is None
    tm = cfg["tm"] if tm is None else tm
    tn = cfg["tn"] if tn is None else tn
    tk = cfg["tk"] if tk is None else tk
    vmem = cfg["vmem"]

    # Clamp to (8,128)-aligned tiles no larger than the (padded) problem.
    tm = min(tm, _round_up(M, 8))
    tn = min(tn, _round_up(N, 128))
    tk = min(tk, _round_up(K, 128))

    Mp = _round_up(M, tm)
    Np = _round_up(N, tn)
    Kp = _round_up(K, tk)

    # v7x: both TensorCores are sharded over the parallel grid axes; make sure
    # there are at least 2 blocks to shard.
    if cfg["two_core"] and auto_tn:
        while (Mp // tm) * (Np // tn) < 2 and tn > 128:
            tn //= 2
            Np = _round_up(N, tn)

    # Gated bias b*exp(-b^2), computed once in the wrapper (f32, padded).
    # Zero padding is gate-invariant: gate(0) = 0.
    if bias is None:
        bg = jnp.zeros((Np,), jnp.float32)
    else:
        b = bias.astype(jnp.float32)
        bg = _pad_to(b * jnp.exp(-(b * b)), (Np,))
    bg = bg.reshape(1, Np)

    # ----------------------------- fast path --------------------------------
    if Mp // tm == 1:
        xp = _pad_to(x, (Mp, Kp))                 # keep dtype; cast in-kernel
        wp = _pad_to(weight, (Np, Kp))            # raw (N, K) weight
        out = pl.pallas_call(
            functools.partial(_small_m_kernel, mxu_dtype=mxu_dtype),
            out_shape=jax.ShapeDtypeStruct((Mp, Np), out_dtype),
            grid=(Np // tn, Kp // tk),
            in_specs=[
                pl.BlockSpec((tm, tk), lambda j, k: (0, k)),   # x tile
                pl.BlockSpec((tn, tk), lambda j, k: (j, k)),   # raw weight
                pl.BlockSpec((1, tn), lambda j, k: (0, j)),    # gated bias
            ],
            out_specs=pl.BlockSpec((tm, tn), lambda j, k: (0, j)),
            scratch_shapes=[pltpu.VMEM((tm, tn), jnp.float32)],
            compiler_params=pltpu.CompilerParams(
                dimension_semantics=("parallel", "arbitrary"),
                vmem_limit_bytes=vmem),
        )(xp, wp, bg)
        return out[:M, :N]

    # ---------------------------- general path ------------------------------
    # One-shot fused gate + transpose pass over the weight:
    # f32 (Np, Kp) -> bf16 (Kp, Np), large lane-dense tiles.
    wp = _pad_to(weight, (Np, Kp))
    wg = pl.pallas_call(
        _gate_transpose_kernel,
        out_shape=jax.ShapeDtypeStruct((Kp, Np), mxu_dtype),
        grid=(Kp // tk, Np // tn),
        in_specs=[pl.BlockSpec((tn, tk), lambda ki, ni: (ni, ki))],
        out_specs=pl.BlockSpec((tk, tn), lambda ki, ni: (ki, ni)),
        compiler_params=pltpu.CompilerParams(
            dimension_semantics=("parallel", "parallel"),
            vmem_limit_bytes=vmem),
    )(wp)

    xp = _pad_to(x, (Mp, Kp))
    if Np // tn >= 3:
        # x is streamed N/tn times by the matmul: a one-time wrapper cast to
        # bf16 halves that traffic.  Below 3 re-reads the extra HBM round trip
        # of the cast does not pay off, so the kernel casts per-tile instead.
        xp = xp.astype(mxu_dtype)

    out = pl.pallas_call(
        functools.partial(_matmul_kernel, mxu_dtype=mxu_dtype),
        out_shape=jax.ShapeDtypeStruct((Mp, Np), out_dtype),
        grid=(Mp // tm, Np // tn, Kp // tk),
        in_specs=[
            pl.BlockSpec((tm, tk), lambda i, j, k: (i, k)),    # x tile
            pl.BlockSpec((tk, tn), lambda i, j, k: (k, j)),    # gated weight.T
            pl.BlockSpec((1, tn), lambda i, j, k: (0, j)),     # gated bias
        ],
        out_specs=pl.BlockSpec((tm, tn), lambda i, j, k: (i, j)),
        scratch_shapes=[pltpu.VMEM((tm, tn), jnp.float32)],
        compiler_params=pltpu.CompilerParams(
            dimension_semantics=("parallel", "parallel", "arbitrary"),
            vmem_limit_bytes=vmem),
    )(xp, wg, bg)

    return out[:M, :N]


def xlu_linear_ref(x, weight, bias=None):
    w = weight * jnp.exp(-weight ** 2)
    out = x @ w.T
    if bias is not None:
        out = out + bias * jnp.exp(-bias ** 2)
    return out


if __name__ == "__main__":
    key = jax.random.PRNGKey(0)
    kx, kw, kb, kx2, kw2, kb2 = jax.random.split(key, 6)

    # ---- Test 1: module-sized small shapes (exercises the small-M fused
    # gate-in-matmul fast path) ----
    batch, in_features, out_features = 8, 32, 16
    bound = math.sqrt(3.0) / math.sqrt(in_features)
    weight = jax.random.uniform(kw, (out_features, in_features),
                                dtype=jnp.float32, minval=-bound, maxval=bound)
    # reset_parameters() zero-inits the bias; use a small nonzero bias so the
    # bias-gating path is actually exercised.
    bias = jax.random.uniform(kb, (out_features,), dtype=jnp.float32,
                              minval=-0.5, maxval=0.5)
    x = jax.random.normal(kx, (batch, in_features), dtype=jnp.float32)

    out = jax.block_until_ready(xlu_linear(x, weight, bias))
    ref = xlu_linear_ref(x, weight, bias)
    assert out.shape == (batch, out_features)
    assert jnp.allclose(out, ref, atol=5e-2, rtol=5e-2), \
        float(jnp.max(jnp.abs(out - ref)))

    # ---- Test 2: force small tiles so the general path (fused gate+transpose
    # pass + 3-D tiled matmul) is compiled and checked too ----
    m2, k2, n2 = 64, 256, 384
    bound2 = math.sqrt(3.0) / math.sqrt(k2)
    w2 = jax.random.uniform(kw2, (n2, k2), dtype=jnp.float32,
                            minval=-bound2, maxval=bound2)
    b2 = jax.random.uniform(kb2, (n2,), dtype=jnp.float32,
                            minval=-0.5, maxval=0.5)
    x2 = jax.random.normal(kx2, (m2, k2), dtype=jnp.float32)

    out2 = jax.block_until_ready(xlu_linear(x2, w2, b2, tm=16, tn=128, tk=128))
    ref2 = xlu_linear_ref(x2, w2, b2)
    assert jnp.allclose(out2, ref2, atol=5e-2, rtol=5e-2), \
        float(jnp.max(jnp.abs(out2 - ref2)))

    # ---- Test 3: bias=None path ----
    out3 = jax.block_until_ready(xlu_linear(x, weight, None))
    ref3 = xlu_linear_ref(x, weight, None)
    assert jnp.allclose(out3, ref3, atol=5e-2, rtol=5e-2)

    print("KERNEL_OK")
</pallas_src>

<mosaic_0001>
module attributes {stable_mosaic.version = 11 : i64} {
  func.func @_small_m_kernel(%arg0: i32, %arg1: i32, %arg2: memref<8x128xf32, #tpu.memory_space<vmem>>, %arg3: memref<128x128xf32, #tpu.memory_space<vmem>>, %arg4: memref<1x128xf32, #tpu.memory_space<vmem>>, %arg5: memref<8x128xf32, #tpu.memory_space<vmem>>, %arg6: memref<8x128xf32, #tpu.memory_space<vmem>>) attributes {dimension_semantics = [#tpu.dimension_semantics<parallel>, #tpu.dimension_semantics<arbitrary>], iteration_bounds = array<i64: 1, 1>, scalar_prefetch = 0 : i64, scratch_operands = 1 : i64, tpu.core_type = #tpu.core_type<tc>, window_params = [{transform_indices = @transform_0, window_bounds = array<i64: 8, 128>}, {transform_indices = @transform_1, window_bounds = array<i64: 128, 128>}, {transform_indices = @transform_2, window_bounds = array<i64: 1, 128>}, {transform_indices = @transform_3, window_bounds = array<i64: 8, 128>}]} {
    %c0_i32 = arith.constant 0 : i32
    %0 = arith.cmpi eq, %arg1, %c0_i32 : i32
    %1 = arith.extui %0 : i1 to i32
    %c0_i32_0 = arith.constant 0 : i32
    %2 = arith.cmpi ne, %1, %c0_i32_0 : i32
    scf.if %2 {
      %cst_11 = arith.constant 0.000000e+00 : f32
      %19 = vector.broadcast %cst_11 : f32 to vector<8x128xf32>
      %c0_12 = arith.constant 0 : index
      %c0_13 = arith.constant 0 : index
      %20 = vector.load %arg6[%c0_12, %c0_13] : memref<8x128xf32, #tpu.memory_space<vmem>>, vector<8x128xf32>
      tpu.vector_store %arg6[%c0_12, %c0_13], %19 {strides = array<i32>} : memref<8x128xf32, #tpu.memory_space<vmem>>, vector<8x128xf32>,
    } else {
    }
    %c0 = arith.constant 0 : index
    %c0_1 = arith.constant 0 : index
    %3 = vector.load %arg3[%c0, %c0_1] : memref<128x128xf32, #tpu.memory_space<vmem>>, vector<128x128xf32>
    %4 = arith.mulf %3, %3 : vector<128x128xf32>
    %cst = arith.constant 0.000000e+00 : f32
    %5 = vector.broadcast %cst : f32 to vector<128x128xf32>
    %6 = arith.subf %5, %4 : vector<128x128xf32>
    %7 = math.exp %6 : vector<128x128xf32>
    %8 = arith.mulf %3, %7 : vector<128x128xf32>
    %9 = arith.truncf %8 : vector<128x128xf32> to vector<128x128xbf16>
    %c0_2 = arith.constant 0 : index
    %c0_3 = arith.constant 0 : index
    %10 = vector.load %arg2[%c0_2, %c0_3] : memref<8x128xf32, #tpu.memory_space<vmem>>, vector<8x128xf32>
    %11 = arith.truncf %10 : vector<8x128xf32> to vector<8x128xbf16>
    %c0_4 = arith.constant 0 : index
    %c0_5 = arith.constant 0 : index
    %12 = vector.load %arg6[%c0_4, %c0_5] : memref<8x128xf32, #tpu.memory_space<vmem>>, vector<8x128xf32>
    %cst_6 = arith.constant dense<0.000000e+00> : vector<8x128xf32>
    %13 = tpu.matmul %11, %9, %cst_6 {dimension_numbers = #tpu.dot_dimension_numbers<[1], [1], [0], [0], [0, 0, 1, 0], [], []>} : vector<8x128xbf16>, vector<128x128xbf16>, vector<8x128xf32> -> vector<8x128xf32>
    %14 = arith.addf %12, %13 : vector<8x128xf32>
    %c0_7 = arith.constant 0 : index
    %c0_8 = arith.constant 0 : index
    %15 = vector.load %arg6[%c0_7, %c0_8] : memref<8x128xf32, #tpu.memory_space<vmem>>, vector<8x128xf32>
    tpu.vector_store %arg6[%c0_7, %c0_8], %14 {strides = array<i32>} : memref<8x128xf32, #tpu.memory_space<vmem>>, vector<8x128xf32>,
    %c0_i32_9 = arith.constant 0 : i32
    %16 = arith.cmpi eq, %arg1, %c0_i32_9 : i32
    %17 = arith.extui %16 : i1 to i32
    %c0_i32_10 = arith.constant 0 : i32
    %18 = arith.cmpi ne, %17, %c0_i32_10 : i32
    scf.if %18 {
      %c0_11 = arith.constant 0 : index
      %c0_12 = arith.constant 0 : index
      %19 = vector.load %arg6[%c0_11, %c0_12] : memref<8x128xf32, #tpu.memory_space<vmem>>, vector<8x128xf32>
      %c0_13 = arith.constant 0 : index
      %c0_14 = arith.constant 0 : index
      %20 = vector.load %arg4[%c0_13, %c0_14] : memref<1x128xf32, #tpu.memory_space<vmem>>, vector<1x128xf32>
      %21 = vector.broadcast %20 : vector<1x128xf32> to vector<8x128xf32>
      %22 = arith.addf %19, %21 : vector<8x128xf32>
      %c0_15 = arith.constant 0 : index
      %c0_16 = arith.constant 0 : index
      %23 = vector.load %arg5[%c0_15, %c0_16] : memref<8x128xf32, #tpu.memory_space<vmem>>, vector<8x128xf32>
      tpu.vector_store %arg5[%c0_15, %c0_16], %22 {strides = array<i32>} : memref<8x128xf32, #tpu.memory_space<vmem>>, vector<8x128xf32>,
    } else {
    }
    return
  }
  func.func @transform_0(%arg0: i32, %arg1: i32) -> (i32, i32) {
    %c0_i32 = arith.constant 0 : i32
    %c0_i32_0 = arith.constant 0 : i32
    return %c0_i32, %arg1 : i32, i32
  }
  func.func @transform_1(%arg0: i32, %arg1: i32) -> (i32, i32) {
    %c0_i32 = arith.constant 0 : i32
    return %arg0, %arg1 : i32, i32
  }
  func.func @transform_2(%arg0: i32, %arg1: i32) -> (i32, i32) {
    %c0_i32 = arith.constant 0 : i32
    %c0_i32_0 = arith.constant 0 : i32
    return %c0_i32, %arg0 : i32, i32
  }
  func.func @transform_3(%arg0: i32, %arg1: i32) -> (i32, i32) {
    %c0_i32 = arith.constant 0 : i32
    %c0_i32_0 = arith.constant 0 : i32
    return %c0_i32, %arg0 : i32, i32
  }
}

</mosaic_0001>

<llo_original>
// kernel: tpu_custom_call.1
$region0: #{tpu_custom_call.1}
  #allocation0 [shape = 'u32[]', space=smem, size = 0x4, offset = 0x4, fixed_abs, tag = 'smem constant byte address 0x4 - core index']
  #allocation1 [shape = 'u32[144,128]{1,0:T(1,128)}', space=vmem, size = 0x12000, scoped, tag = 'internal scratch']
  #allocation2 [shape = 'f32[8,128]{1,0:T(8,128)}', space=vmem, size = 0x1000, scoped, tag = 'scratch operand']
  %s0 = inlined_call_operand.hbm [shape: f32[8,128], index: 0, kind: input, shape index: {}]
  %s1 = inlined_call_operand.hbm [shape: f32[128,128], index: 1, kind: input, shape index: {}]
  %s2 = inlined_call_operand.hbm [shape: f32[1,128], index: 2, kind: input, shape index: {}]
  %s3 = inlined_call_operand.hbm [shape: f32[8,128], index: 3, kind: output, shape index: {}]
  %s4 = sld [smem:[#allocation0]]
  $region42: #{tpu_custom_call.1} parent=0
    _
  %s6 = ssub.s32 1, %s4
  %s7 = scalar_select 0, %s6, %s4
  $region1: #{tpu_custom_call.1} parent=0
    #allocation3 [shape = 'u8[4096]{0}', space=vmem, size = 0x1000, scoped, tag = 'input window, operand 0, single buffered']
    #allocation4 [shape = 's32[1]{0}', space=sflag, size = 0x4, scoped, tag = 'scoped memory for tpu_custom_call.1']
    #allocation5 [shape = 's32[1]{0}', space=sflag, size = 0x4, scoped, tag = 'scoped memory for tpu_custom_call.1']
    #allocation6 [shape = 'u8[65536]{0}', space=vmem, size = 0x10000, scoped, tag = 'input window, operand 1, single buffered']
    #allocation7 [shape = 's32[1]{0}', space=sflag, size = 0x4, scoped, tag = 'scoped memory for tpu_custom_call.1']
    #allocation8 [shape = 'u8[512]{0}', space=vmem, size = 0x400, scoped, tag = 'input window, operand 2, single buffered']
    #allocation9 [shape = 'u8[4096]{0}', space=vmem, size = 0x1000, scoped, tag = 'output window, operand 0, single buffered']
    %8 = vsyncpa [#allocation4], 0
    %9 = vsyncpa [#allocation7], 0
    %10 = vsyncpa [#allocation5], 0
    // Predicated region
    $region2: #{tpu_custom_call.1} parent=1 // pred_check
      _
    $region3: #{tpu_custom_call.1} parent=1 // pred_check_branch
      %12 = sbr.rel (0) target = $region5
    $region4: #{tpu_custom_call.1} parent=1 // pred_region
      %s14 = ssub.s32 128, 128
      %15 = vsyncadd [#allocation4], %s14
      %s17 = sshll.u32 [#allocation3], 4
      %s18 = int_to_ptr.vmem [resolvable:$true] %s17
      %20 = dma.hbm_to_vmem [thread:$0]  %s0, 128, %s18, [#allocation4]
    $region5: #{tpu_custom_call.1} parent=1 // pred_fallthru
      _
    // Predicated region
    $region6: #{tpu_custom_call.1} parent=1 // pred_check
      _
    $region7: #{tpu_custom_call.1} parent=1 // pred_check_branch
      %22 = sbr.rel (0) target = $region9
    $region8: #{tpu_custom_call.1} parent=1 // pred_region
      %s24 = ssub.s32 2048, 2048
      %25 = vsyncadd [#allocation7], %s24
      %s26 = sshll.u32 [#allocation6], 4
      %s27 = int_to_ptr.vmem [resolvable:$true] %s26
      %32 = dma.hbm_to_vmem [thread:$0]  %s1, 2048, %s27, [#allocation7], 128, 128, 8
    $region9: #{tpu_custom_call.1} parent=1 // pred_fallthru
      _
    // Predicated region
    $region10: #{tpu_custom_call.1} parent=1 // pred_check
      _
    $region11: #{tpu_custom_call.1} parent=1 // pred_check_branch
      %34 = sbr.rel (0) target = $region13
    $region12: #{tpu_custom_call.1} parent=1 // pred_region
      %s36 = ssub.s32 16, 16
      %37 = vsyncadd [#allocation7], %s36
      %s39 = sshll.u32 [#allocation8], 4
      %s40 = int_to_ptr.vmem [resolvable:$true] %s39
      %42 = dma.hbm_to_vmem [thread:$0]  %s2, 16, %s40, [#allocation7]
    $region13: #{tpu_custom_call.1} parent=1 // pred_fallthru
      _
    // Predicated region
    $region14: #{tpu_custom_call.1} parent=1 // pred_check
      _
    $region15: #{tpu_custom_call.1} parent=1 // pred_check_branch
      %44 = sbr.rel (0) target = $region17
    $region16: #{tpu_custom_call.1} parent=1 // pred_region
      %45 = dma.done [#allocation4], 128
    $region17: #{tpu_custom_call.1} parent=1 // pred_fallthru
      _
    // Predicated region
    $region18: #{tpu_custom_call.1} parent=1 // pred_check
      _
    $region19: #{tpu_custom_call.1} parent=1 // pred_check_branch
      %47 = sbr.rel (0) target = $region21
    $region20: #{tpu_custom_call.1} parent=1 // pred_region
      %48 = dma.done [#allocation7], 2048
    $region21: #{tpu_custom_call.1} parent=1 // pred_fallthru
      _
    // Predicated region
    $region22: #{tpu_custom_call.1} parent=1 // pred_check
      _
    $region23: #{tpu_custom_call.1} parent=1 // pred_check_branch
      %50 = sbr.rel (0) target = $region25
    $region24: #{tpu_custom_call.1} parent=1 // pred_region
      %51 = dma.done [#allocation7], 16
    $region25: #{tpu_custom_call.1} parent=1 // pred_fallthru
      _
    %p53 = scmp.eq.s32.totalorder 0, 0
    // Predicated region
    $region26: #{tpu_custom_call.1} parent=1 // pred_check
      %p54 = pneg %p53
    $region27: #{tpu_custom_call.1} parent=1 // pred_check_branch
      %56 = sbr.rel (%p54) target = $region29
    $region28: #{tpu_custom_call.1} parent=1 // pred_region
      %57 = vst [vmem:[#allocation2] sm:$0xff] 0.0
    $region29: #{tpu_custom_call.1} parent=1 // pred_fallthru
      _
    %v58 = vld [vmem:[#allocation6] sm:$0xff]
    %v59 = vld [vmem:[#allocation6 + $0x8] sm:$0xff]
    %v60 = vld [vmem:[#allocation6 + $0x10] sm:$0xff]
    %v61 = vld [vmem:[#allocation6 + $0x18] sm:$0xff]
    %v62 = vld [vmem:[#allocation6 + $0x20] sm:$0xff]
    %v63 = vld [vmem:[#allocation6 + $0x28] sm:$0xff]
    %v64 = vld [vmem:[#allocation6 + $0x30] sm:$0xff]
    %v65 = vld [vmem:[#allocation6 + $0x38] sm:$0xff]
    %v66 = vld [vmem:[#allocation6 + $0x40] sm:$0xff]
    %v67 = vld [vmem:[#allocation6 + $0x48] sm:$0xff]
    %v68 = vld [vmem:[#allocation6 + $0x50] sm:$0xff]
    %v69 = vld [vmem:[#allocation6 + $0x58] sm:$0xff]
    %v70 = vld [vmem:[#allocation6 + $0x60] sm:$0xff]
    %v71 = vld [vmem:[#allocation6 + $0x68] sm:$0xff]
    %v72 = vld [vmem:[#allocation6 + $0x70] sm:$0xff]
    %v73 = vld [vmem:[#allocation6 + $0x78] sm:$0xff]
    %v74 = vmul.f32 %v58, %v58
    %v75 = vmul.f32 %v59, %v59
    %v76 = vmul.f32 %v60, %v60
    %v77 = vmul.f32 %v61, %v61
    %v78 = vmul.f32 %v62, %v62
    %v79 = vmul.f32 %v63, %v63
    %v80 = vmul.f32 %v64, %v64
    %v81 = vmul.f32 %v65, %v65
    %v82 = vmul.f32 %v66, %v66
    %v83 = vmul.f32 %v67, %v67
    %v84 = vmul.f32 %v68, %v68
    %v85 = vmul.f32 %v69, %v69
    %v86 = vmul.f32 %v70, %v70
    %v87 = vmul.f32 %v71, %v71
    %v88 = vmul.f32 %v72, %v72
    %v89 = vmul.f32 %v73, %v73
    %v90 = vsub.f32 0.0, %v74
    %v91 = vsub.f32 0.0, %v75
    %v92 = vsub.f32 0.0, %v76
    %v93 = vsub.f32 0.0, %v77
    %v94 = vsub.f32 0.0, %v78
    %v95 = vsub.f32 0.0, %v79
    %v96 = vsub.f32 0.0, %v80
    %v97 = vsub.f32 0.0, %v81
    %v98 = vsub.f32 0.0, %v82
    %v99 = vsub.f32 0.0, %v83
    %v100 = vsub.f32 0.0, %v84
    %v101 = vsub.f32 0.0, %v85
    %v102 = vsub.f32 0.0, %v86
    %v103 = vsub.f32 0.0, %v87
    %v104 = vsub.f32 0.0, %v88
    %v105 = vsub.f32 0.0, %v89
    %v106 = vmul.f32 %v90, 1.442695
    %v107 = vpow.pop %v106
    %v108 = vmul.f32 %v91, 1.442695
    %v109 = vpow.pop %v108
    %v110 = vmul.f32 %v92, 1.442695
    %v111 = vpow.pop %v110
    %v112 = vmul.f32 %v93, 1.442695
    %v113 = vpow.pop %v112
    %v114 = vmul.f32 %v94, 1.442695
    %v115 = vpow.pop %v114
    %v116 = vmul.f32 %v95, 1.442695
    %v117 = vpow.pop %v116
    %v118 = vmul.f32 %v96, 1.442695
    %v119 = vpow.pop %v118
    %v120 = vmul.f32 %v97, 1.442695
    %v121 = vpow.pop %v120
    %v122 = vmul.f32 %v98, 1.442695
    %v123 = vpow.pop %v122
    %v124 = vmul.f32 %v99, 1.442695
    %v125 = vpow.pop %v124
    %v126 = vmul.f32 %v100, 1.442695
    %v127 = vpow.pop %v126
    %v128 = vmul.f32 %v101, 1.442695
    %v129 = vpow.pop %v128
    %v130 = vmul.f32 %v102, 1.442695
    %v131 = vpow.pop %v130
    %v132 = vmul.f32 %v103, 1.442695
    %v133 = vpow.pop %v132
    %v134 = vmul.f32 %v104, 1.442695
    %v135 = vpow.pop %v134
    %v136 = vmul.f32 %v105, 1.442695
    %v137 = vpow.pop %v136
    %v138 = vmul.f32 %v58, %v107
    %v139 = vmul.f32 %v59, %v109
    %v140 = vmul.f32 %v60, %v111
    %v141 = vmul.f32 %v61, %v113
    %v142 = vmul.f32 %v62, %v115
    %v143 = vmul.f32 %v63, %v117
    %v144 = vmul.f32 %v64, %v119
    %v145 = vmul.f32 %v65, %v121
    %v146 = vmul.f32 %v66, %v123
    %v147 = vmul.f32 %v67, %v125
    %v148 = vmul.f32 %v68, %v127
    %v149 = vmul.f32 %v69, %v129
    %v150 = vmul.f32 %v70, %v131
    %v151 = vmul.f32 %v71, %v133
    %v152 = vmul.f32 %v72, %v135
    %v153 = vmul.f32 %v73, %v137
    %v154 = vpack.c.bf16 %v139, %v138
    %v155 = vpack.c.bf16 %v141, %v140
    %v156 = vpack.c.bf16 %v143, %v142
    %v157 = vpack.c.bf16 %v145, %v144
    %v158 = vpack.c.bf16 %v147, %v146
    %v159 = vpack.c.bf16 %v149, %v148
    %v160 = vpack.c.bf16 %v151, %v150
    %v161 = vpack.c.bf16 %v153, %v152
    %v162 = vld [vmem:[#allocation3] sm:$0xff]
    %v163 = vpack.c.bf16 %v162, %v162
    %v164 = vld [vmem:[#allocation2] sm:$0xff]
    %165 = vmatprep.subr.bf16.mxu0 0
    %166 = vmatpush1.bf16.xpose.msra.mxu0 %v154
    %167 = vmatprep.subr.bf16.mxu0 0
    %168 = vmatpush1.bf16.xpose.msra.mxu0 %v155
    %169 = vmatprep.subr.bf16.mxu0 0
    %170 = vmatpush1.bf16.xpose.msra.mxu0 %v156
    %171 = vmatprep.subr.bf16.mxu0 0
    %172 = vmatpush1.bf16.xpose.msra.mxu0 %v157
    %173 = vmatprep.subr.bf16.mxu0 0
    %174 = vmatpush1.bf16.xpose.msra.mxu0 %v158
    %175 = vmatprep.subr.bf16.mxu0 0
    %176 = vmatpush1.bf16.xpose.msra.mxu0 %v159
    %177 = vmatprep.subr.bf16.mxu0 0
    %178 = vmatpush1.bf16.xpose.msra.mxu0 %v160
    %179 = vmatprep.subr.bf16.mxu0 0
    %180 = vmatpush1.bf16.xpose.msra.mxu0 %v161
    %181 = vmatprep.subr.bf16.mxu0 0
    %182 = vmatpush1.bf16.xpose.msra.mxu0 0
    %183 = vmatprep.subr.bf16.mxu0 0
    %184 = vmatpush1.bf16.xpose.msra.mxu0 0
    %185 = vmatprep.subr.bf16.mxu0 0
    %186 = vmatpush1.bf16.xpose.msra.mxu0 0
    %187 = vmatprep.subr.bf16.mxu0 0
    %188 = vmatpush1.bf16.xpose.msra.mxu0 0
    %189 = vmatprep.subr.bf16.mxu0 0
    %190 = vmatpush1.bf16.xpose.msra.mxu0 0
    %191 = vmatprep.subr.bf16.mxu0 0
    %192 = vmatpush1.bf16.xpose.msra.mxu0 0
    %193 = vmatprep.subr.bf16.mxu0 0
    %194 = vmatpush1.bf16.xpose.msra.mxu0 0
    %195 = vmatprep.subr.bf16.mxu0 0
    %196 = vmatpush1.bf16.xpose.msra.mxu0 0
    %197 = vmatprep.mubr.bf16.mxu0 0
    %198 = vmatmul.mubr.bf16.gmra.mrb[0].mxu0 %v163
    %v199 = vpop.f32.mrb[0].mxu0
    %v200 = vadd.f32 0.0, %v199
    %v201 = vpop.f32.mrb[0].mxu0
    %v202 = vpop.f32.mrb[0].mxu0
    %v203 = vpop.f32.mrb[0].mxu0
    %204 = vdwg.mxu0
    %v205 = vadd.f32 %v164, %v200
    %206 = vst [vmem:[#allocation2] sm:$0xff] %v205
    // Predicated region
    $region30: #{tpu_custom_call.1} parent=1 // pred_check
      %p207 = pneg %p53
    $region31: #{tpu_custom_call.1} parent=1 // pred_check_branch
      %209 = sbr.rel (%p207) target = $region33
    $region32: #{tpu_custom_call.1} parent=1 // pred_region
      %v210 = vld [vmem:[#allocation2] sm:$0xff]
      %v211 = vld [vmem:[#allocation8] sm:$0x1]
      %v213 = vlaneseq
      %v214 = vshrl.u32 %v213, 7
      %v215 = vsub.s32 0, %v214
      %v216 = vrot.slane %v211, %v215
      %v218 = vadd.f32 %v210, %v216
      %219 = vst [vmem:[#allocation9] sm:$0xff] %v218
    $region33: #{tpu_custom_call.1} parent=1 // pred_fallthru
      _
    // Predicated region
    $region34: #{tpu_custom_call.1} parent=1 // pred_check
      _
    $region35: #{tpu_custom_call.1} parent=1 // pred_check_branch
      %221 = sbr.rel (0) target = $region37
    $region36: #{tpu_custom_call.1} parent=1 // pred_region
      %s223 = ssub.s32 128, 128
      %224 = vsyncadd [#allocation5], %s223
      %s226 = sshll.u32 [#allocation9], 4
      %s227 = int_to_ptr.vmem [resolvable:$true] %s226
      %229 = dma.vmem_to_hbm [thread:$0]  %s227, 128, %s3, [#allocation5]
    $region37: #{tpu_custom_call.1} parent=1 // pred_fallthru
      _
    // Predicated region
    $region38: #{tpu_custom_call.1} parent=1 // pred_check
      _
    $region39: #{tpu_custom_call.1} parent=1 // pred_check_branch
      %231 = sbr.rel (0) target = $region41
    $region40: #{tpu_custom_call.1} parent=1 // pred_region
      %232 = dma.done [#allocation5], 128
    $region41: #{tpu_custom_call.1} parent=1 // pred_fallthru
      _
    %233 = vsyncpa [#allocation4], 1
    %234 = vsyncpa [#allocation7], 1
    %235 = vsyncpa [#allocation5], 1

</llo_original>
